<compile_context>
chip_gen: v7x
topology: tpu7x:2x2x1
jax: 0.10.0
libtpu: 0.0.40
codegen_flags: <defaults>
</compile_context>

<pallas_src>
import functools

import jax
import jax.numpy as jnp
from jax.experimental import pallas as pl
from jax.experimental.pallas import tpu as pltpu


def _conv_matmul_kernel(w_ref, p_ref, b_ref, o_ref):
    """out_T (Cout, tm) = W (Cout, Kp) @ patches_T (Kp, tm) + bias (Cout, 1).

    Full reduction dim resident in VMEM -> no K grid axis, no accumulator
    scratch; single MXU pass, one VPU bias add, lane-dense output store."""
    o_ref[...] = (
        jnp.dot(w_ref[...], p_ref[...], preferred_element_type=jnp.float32)
        + b_ref[...]
    )


def _im2col_t(x, K, stride):
    """x: (B, C, H, W) -> patches_T: (C*K*K, B*OH*OW).

    Kd axis uses (C, ki, kj) flattening (kj fastest) to match PyTorch's
    weight.reshape(C_out, -1) ordering; M axis is (b, oh, ow), ow fastest."""
    B, C, H, W = x.shape
    OH = (H - K) // stride + 1
    OW = (W - K) // stride + 1
    cols = []
    for ki in range(K):
        for kj in range(K):
            cols.append(
                x[:, :, ki:ki + stride * OH:stride, kj:kj + stride * OW:stride]
            )  # (B, C, OH, OW)
    patches = jnp.stack(cols, axis=2)              # (B, C, K*K, OH, OW)
    patches = patches.transpose(1, 2, 0, 3, 4)     # (C, K*K, B, OH, OW)
    return patches.reshape(C * K * K, B * OH * OW), OH, OW


def _round_up(v, m):
    return ((v + m - 1) // m) * m


def conv2d_pallas(x, weight, bias, stride):
    """Matches the reference PyTorch Conv2d.forward (valid conv + bias), NCHW."""
    B, C, H, W = x.shape
    Cout, Cin, K, _ = weight.shape
    assert Cin == C

    # bf16 operands (f32 accumulation on the MXU inside the kernel).
    xb = x.astype(jnp.bfloat16)
    wb = weight.astype(jnp.bfloat16)

    patches_t, OH, OW = _im2col_t(xb, K, stride)   # (Kd, M) bf16
    Kd, M = patches_t.shape
    wmat = wb.reshape(Cout, Kd)                    # (Cout, Kd) bf16 (no transpose)
    bias2d = bias.astype(jnp.float32).reshape(Cout, 1)

    # ---- tile selection -----------------------------------------------------
    Kp = _round_up(Kd, 128)                        # full reduction resident, n_k = 1
    Mp0 = _round_up(M, 128)

    # Per-M-column VMEM bytes: double-buffered bf16 patches + f32 output column.
    per_col = 2 * Kp * 2 + 2 * Cout * 4
    budget = 28 * 1024 * 1024                      # v7x-safe (64 MiB physical / TC)
    tm = max(128, min(2048, (budget // per_col) // 128 * 128, Mp0))
    if Mp0 >= 256:                                 # keep >=2 M tiles for v7x's 2 TCs
        tm = min(tm, max(128, _round_up(Mp0 // 2, 128)))
    Mp = _round_up(M, tm)
    n_m = Mp // tm

    patches_t = jnp.pad(patches_t, ((0, Kp - Kd), (0, Mp - M)))
    wmat = jnp.pad(wmat, ((0, 0), (0, Kp - Kd)))

    vmem_bytes = (2 * Kp * tm * 2        # patches tile (double-buffered)
                  + 2 * Cout * Kp * 2    # resident weights
                  + 2 * Cout * tm * 4    # output tile
                  + 2 * 8 * 128 * 4)     # bias (padded vreg tile)
    vmem_limit = min(40 * 1024 * 1024,
                     max(vmem_bytes + (4 << 20), 16 * 1024 * 1024))

    cost = pl.CostEstimate(
        flops=2 * M * Kd * Cout,
        transcendentals=0,
        bytes_accessed=Kp * Mp * 2 + Cout * Kp * 2 + Cout * Mp * 4,
    )

    out_t = pl.pallas_call(
        _conv_matmul_kernel,
        out_shape=jax.ShapeDtypeStruct((Cout, Mp), jnp.float32),
        grid=(n_m,),
        in_specs=[
            pl.BlockSpec((Cout, Kp), lambda m: (0, 0)),   # weights, resident
            pl.BlockSpec((Kp, tm), lambda m: (0, m)),     # patches tile
            pl.BlockSpec((Cout, 1), lambda m: (0, 0)),    # bias
        ],
        out_specs=pl.BlockSpec((Cout, tm), lambda m: (0, m)),
        compiler_params=pltpu.CompilerParams(
            dimension_semantics=("parallel",),
            vmem_limit_bytes=vmem_limit,
        ),
        cost_estimate=cost,
    )(wmat, patches_t, bias2d)

    out_t = out_t[:, :M]                                  # (Cout, B*OH*OW)
    # (Cout, B, OH, OW) -> NCHW to match the PyTorch module's output layout.
    return out_t.reshape(Cout, B, OH, OW).transpose(1, 0, 2, 3)


if __name__ == "__main__":
    key = jax.random.PRNGKey(0)
    kx, kw = jax.random.split(key)

    # Module config (small, consistent with the PyTorch module's __init__)
    in_channels, out_channels, kernel_size, stride = 4, 8, 3, 2
    B, H, W = 2, 16, 16

    x = jax.random.normal(kx, (B, in_channels, H, W), dtype=jnp.float32)
    weight = jax.random.normal(
        kw, (out_channels, in_channels, kernel_size, kernel_size),
        dtype=jnp.float32,
    )  # torch.randn equivalent (deterministic via PRNGKey)
    bias = jnp.zeros((out_channels,), dtype=jnp.float32)  # torch.zeros equivalent

    fwd = jax.jit(functools.partial(conv2d_pallas, stride=stride))
    y = jax.block_until_ready(fwd(x, weight, bias))

    # Reference: XLA conv on the *same* bf16-rounded operands (kernel uses bf16
    # inputs with f32 accumulation), so only accumulation order differs.
    xb = x.astype(jnp.bfloat16).astype(jnp.float32)
    wb = weight.astype(jnp.bfloat16).astype(jnp.float32)
    y_ref = jax.lax.conv_general_dilated(
        xb, wb, window_strides=(stride, stride), padding="VALID",
        dimension_numbers=("NCHW", "OIHW", "NCHW"),
    ) + bias.reshape(1, -1, 1, 1)

    OH = (H - kernel_size) // stride + 1
    OW = (W - kernel_size) // stride + 1
    assert y.shape == (B, out_channels, OH, OW)
    assert jnp.allclose(y, y_ref, atol=1e-2, rtol=1e-2), float(
        jnp.max(jnp.abs(y - y_ref))
    )

    print("KERNEL_OK")
</pallas_src>

<mosaic_0001>
module attributes {stable_mosaic.version = 11 : i64} {
  func.func @_conv_matmul_kernel(%arg0: i32, %arg1: memref<8x128xbf16, #tpu.memory_space<vmem>>, %arg2: memref<128x128xbf16, #tpu.memory_space<vmem>>, %arg3: memref<8x1xf32, #tpu.memory_space<vmem>>, %arg4: memref<8x128xf32, #tpu.memory_space<vmem>>) attributes {dimension_semantics = [#tpu.dimension_semantics<parallel>], iteration_bounds = array<i64: 1>, scalar_prefetch = 0 : i64, scratch_operands = 0 : i64, tpu.core_type = #tpu.core_type<tc>, window_params = [{pipeline_mode = #tpu.pipeline_mode<synchronous>, transform_indices = @transform_0, window_bounds = array<i64: 8, 128>}, {transform_indices = @transform_1, window_bounds = array<i64: 128, 128>}, {pipeline_mode = #tpu.pipeline_mode<synchronous>, transform_indices = @transform_2, window_bounds = array<i64: 8, 1>}, {transform_indices = @transform_3, window_bounds = array<i64: 8, 128>}]} {
    %c0 = arith.constant 0 : index
    %c0_0 = arith.constant 0 : index
    %0 = vector.load %arg1[%c0, %c0_0] : memref<8x128xbf16, #tpu.memory_space<vmem>>, vector<8x128xbf16>
    %c0_1 = arith.constant 0 : index
    %c0_2 = arith.constant 0 : index
    %1 = vector.load %arg2[%c0_1, %c0_2] : memref<128x128xbf16, #tpu.memory_space<vmem>>, vector<128x128xbf16>
    %cst = arith.constant dense<0.000000e+00> : vector<8x128xf32>
    %2 = tpu.matmul %0, %1, %cst {dimension_numbers = #tpu.dot_dimension_numbers<[1], [0], [0], [1], [0, 0, 1, 1], [], []>} : vector<8x128xbf16>, vector<128x128xbf16>, vector<8x128xf32> -> vector<8x128xf32>
    %c0_3 = arith.constant 0 : index
    %c0_4 = arith.constant 0 : index
    %3 = vector.load %arg3[%c0_3, %c0_4] : memref<8x1xf32, #tpu.memory_space<vmem>>, vector<8x1xf32>
    %4 = vector.broadcast %3 : vector<8x1xf32> to vector<8x128xf32>
    %5 = arith.addf %2, %4 : vector<8x128xf32>
    %c0_5 = arith.constant 0 : index
    %c0_6 = arith.constant 0 : index
    %6 = vector.load %arg4[%c0_5, %c0_6] : memref<8x128xf32, #tpu.memory_space<vmem>>, vector<8x128xf32>
    tpu.vector_store %arg4[%c0_5, %c0_6], %5 {strides = array<i32>} : memref<8x128xf32, #tpu.memory_space<vmem>>, vector<8x128xf32>,
    return
  }
  func.func @transform_0(%arg0: i32) -> (i32, i32) {
    %c0_i32 = arith.constant 0 : i32
    %c0_i32_0 = arith.constant 0 : i32
    %c0_i32_1 = arith.constant 0 : i32
    return %c0_i32, %c0_i32_0 : i32, i32
  }
  func.func @transform_1(%arg0: i32) -> (i32, i32) {
    %c0_i32 = arith.constant 0 : i32
    %c0_i32_0 = arith.constant 0 : i32
    return %c0_i32, %arg0 : i32, i32
  }
  func.func @transform_2(%arg0: i32) -> (i32, i32) {
    %c0_i32 = arith.constant 0 : i32
    %c0_i32_0 = arith.constant 0 : i32
    %c0_i32_1 = arith.constant 0 : i32
    return %c0_i32, %c0_i32_0 : i32, i32
  }
  func.func @transform_3(%arg0: i32) -> (i32, i32) {
    %c0_i32 = arith.constant 0 : i32
    %c0_i32_0 = arith.constant 0 : i32
    return %c0_i32, %arg0 : i32, i32
  }
}

</mosaic_0001>

<llo_original>
// kernel: conv2d_pallas.1
$region0: #{conv2d_pallas.1}
  #allocation0 [shape = 'u32[]', space=smem, size = 0x4, offset = 0x4, fixed_abs, tag = 'smem constant byte address 0x4 - core index']
  #allocation1 [shape = 'u32[144,128]{1,0:T(1,128)}', space=vmem, size = 0x12000, scoped, tag = 'internal scratch']
  %s0 = inlined_call_operand.vmem [shape: bf16[8,128], index: 0, kind: input, shape index: {}]
  %s1 = inlined_call_operand.vmem [shape: bf16[128,128], index: 1, kind: input, shape index: {}]
  %s2 = inlined_call_operand.vmem [shape: f32[8,1], index: 2, kind: input, shape index: {}]
  %s3 = inlined_call_operand.vmem [shape: f32[8,128], index: 3, kind: output, shape index: {}]
  %s4 = sld [smem:[#allocation0]]
  $region22: #{conv2d_pallas.1} parent=0
    _
  %s6 = ssub.s32 1, %s4
  %s7 = scalar_select 0, %s6, %s4
  // Predicated region
  $region2: #{conv2d_pallas.1} parent=0 // pred_check
    _
  $region3: #{conv2d_pallas.1} parent=0 // pred_check_branch
    %9 = sbr.rel (0) target = $region5
  $region4: #{conv2d_pallas.1} parent=0 // pred_region
    _
  $region5: #{conv2d_pallas.1} parent=0 // pred_fallthru
    _
  // Predicated region
  $region6: #{conv2d_pallas.1} parent=0 // pred_check
    _
  $region7: #{conv2d_pallas.1} parent=0 // pred_check_branch
    %11 = sbr.rel (0) target = $region9
  $region8: #{conv2d_pallas.1} parent=0 // pred_region
    _
  $region9: #{conv2d_pallas.1} parent=0 // pred_fallthru
    _
  // Predicated region
  $region10: #{conv2d_pallas.1} parent=0 // pred_check
    _
  $region11: #{conv2d_pallas.1} parent=0 // pred_check_branch
    %13 = sbr.rel (0) target = $region13
  $region12: #{conv2d_pallas.1} parent=0 // pred_region
    _
  $region13: #{conv2d_pallas.1} parent=0 // pred_fallthru
    _
  %v15 = vld [vmem:[%s0] sm:$0xf]
  %v16 = vld [vmem:[%s1] sm:$0xf]
  %v17 = vld [vmem:[%s1 + $0x4] sm:$0xf]
  %v18 = vld [vmem:[%s1 + $0x8] sm:$0xf]
  %v19 = vld [vmem:[%s1 + $0xc] sm:$0xf]
  %v20 = vld [vmem:[%s1 + $0x10] sm:$0xf]
  %v21 = vld [vmem:[%s1 + $0x14] sm:$0xf]
  %v22 = vld [vmem:[%s1 + $0x18] sm:$0xf]
  %v23 = vld [vmem:[%s1 + $0x1c] sm:$0xf]
  %v24 = vld [vmem:[%s1 + $0x20] sm:$0xf]
  %v25 = vld [vmem:[%s1 + $0x24] sm:$0xf]
  %v26 = vld [vmem:[%s1 + $0x28] sm:$0xf]
  %v27 = vld [vmem:[%s1 + $0x2c] sm:$0xf]
  %v28 = vld [vmem:[%s1 + $0x30] sm:$0xf]
  %v29 = vld [vmem:[%s1 + $0x34] sm:$0xf]
  %v30 = vld [vmem:[%s1 + $0x38] sm:$0xf]
  %v31 = vld [vmem:[%s1 + $0x3c] sm:$0xf]
  %v32 = vld [vmem:[%s2] sm:$0xff]
  %34 = vset.pattern.permute.xlu0 0
  %35 = vperm.xlu0 %34, %v32
  %v36 = vpop.permute.xlu0 %35
  %v54 = vunpack.c.l.b16 %v16
  %v55 = vunpack.c.l.b16 %v17
  %v56 = vunpack.c.l.b16 %v18
  %v57 = vunpack.c.l.b16 %v19
  %v58 = vunpack.c.l.b16 %v20
  %v59 = vunpack.c.l.b16 %v21
  %v60 = vunpack.c.l.b16 %v22
  %v61 = vunpack.c.l.b16 %v23
  %v62 = vunpack.c.l.b16 %v24
  %v63 = vunpack.c.l.b16 %v25
  %v64 = vunpack.c.l.b16 %v26
  %v65 = vunpack.c.l.b16 %v27
  %v66 = vunpack.c.l.b16 %v28
  %v67 = vunpack.c.l.b16 %v29
  %v68 = vunpack.c.l.b16 %v30
  %v69 = vunpack.c.l.b16 %v31
  %v70 = vpack.c.b16 %v55, %v54
  %v71 = vpack.c.b16 %v57, %v56
  %v72 = vpack.c.b16 %v59, %v58
  %v73 = vpack.c.b16 %v61, %v60
  %v74 = vpack.c.b16 %v63, %v62
  %v75 = vpack.c.b16 %v65, %v64
  %v76 = vpack.c.b16 %v67, %v66
  %v77 = vpack.c.b16 %v69, %v68
  %86 = vmatprep.subr.bf16.mxu0 0
  %87 = vmatpush1.bf16.msra.mxu0 %v70
  %88 = vmatprep.subr.bf16.mxu0 0
  %89 = vmatpush1.bf16.msra.mxu0 %v71
  %90 = vmatprep.subr.bf16.mxu0 0
  %91 = vmatpush1.bf16.msra.mxu0 %v72
  %92 = vmatprep.subr.bf16.mxu0 0
  %93 = vmatpush1.bf16.msra.mxu0 %v73
  %94 = vmatprep.subr.bf16.mxu0 0
  %95 = vmatpush1.bf16.msra.mxu0 %v74
  %96 = vmatprep.subr.bf16.mxu0 0
  %97 = vmatpush1.bf16.msra.mxu0 %v75
  %98 = vmatprep.subr.bf16.mxu0 0
  %99 = vmatpush1.bf16.msra.mxu0 %v76
  %100 = vmatprep.subr.bf16.mxu0 0
  %101 = vmatpush1.bf16.msra.mxu0 %v77
  %102 = vmatprep.subr.bf16.mxu0 0
  %103 = vmatpush1.bf16.msra.mxu0 0
  %104 = vmatprep.subr.bf16.mxu0 0
  %105 = vmatpush1.bf16.msra.mxu0 0
  %106 = vmatprep.subr.bf16.mxu0 0
  %107 = vmatpush1.bf16.msra.mxu0 0
  %108 = vmatprep.subr.bf16.mxu0 0
  %109 = vmatpush1.bf16.msra.mxu0 0
  %110 = vmatprep.subr.bf16.mxu0 0
  %111 = vmatpush1.bf16.msra.mxu0 0
  %112 = vmatprep.subr.bf16.mxu0 0
  %113 = vmatpush1.bf16.msra.mxu0 0
  %114 = vmatprep.subr.bf16.mxu0 0
  %115 = vmatpush1.bf16.msra.mxu0 0
  %116 = vmatprep.subr.bf16.mxu0 0
  %117 = vmatpush1.bf16.msra.mxu0 0
  %118 = vmatprep.mubr.bf16.mxu0 0
  %119 = vmatmul.mubr.bf16.gmra.mrb[0].mxu0 %v15
  %v120 = vpop.f32.mrb[0].mxu0
  %v121 = vadd.f32 %v36, %v120
  %v122 = vpop.f32.mrb[0].mxu0
  %v123 = vpop.f32.mrb[0].mxu0
  %v124 = vpop.f32.mrb[0].mxu0
  %125 = vdwg.mxu0
  %126 = vst [vmem:[%s3] sm:$0xff] %v121
  // Predicated region
  $region14: #{conv2d_pallas.1} parent=0 // pred_check
    _
  $region15: #{conv2d_pallas.1} parent=0 // pred_check_branch
    %128 = sbr.rel (0) target = $region17
  $region16: #{conv2d_pallas.1} parent=0 // pred_region
    _
  $region17: #{conv2d_pallas.1} parent=0 // pred_fallthru
    _
  // Predicated region
  $region18: #{conv2d_pallas.1} parent=0 // pred_check
    _
  $region19: #{conv2d_pallas.1} parent=0 // pred_check_branch
    %130 = sbr.rel (0) target = $region21
  $region20: #{conv2d_pallas.1} parent=0 // pred_region
    _
  $region21: #{conv2d_pallas.1} parent=0 // pred_fallthru
    _

</llo_original>
